<compile_context>
chip_gen: v6e
topology: v6e:2x2x1
jax: 0.10.0
libtpu: 0.0.40
codegen_flags: <defaults>
</compile_context>

<pallas_src>
import jax
import jax.numpy as jnp
from jax.experimental import pallas as pl
from jax.experimental.pallas import tpu as pltpu


def _chip_defaults():
    """(target_tile_bytes_per_buffer, vmem_limit_bytes) by TPU generation."""
    try:
        kind = jax.devices()[0].device_kind.lower()
    except Exception:
        kind = ""
    if "v5 lite" in kind or "v5e" in kind or "v5lite" in kind:
        # ~820 GB/s HBM: 4 MiB steps already hide the per-step overhead (<4%).
        return 4 * 1024 * 1024, 32 * 1024 * 1024
    # v6e / v7x (and default): bigger steps amortize the ~0.35 us grid overhead.
    # Footprint: 2 in-bufs + 2 out-bufs * 8 MiB = 32 MiB (< v7x's 64 MiB VMEM).
    return 8 * 1024 * 1024, 40 * 1024 * 1024


def _scale_kernel(scale_ref, x_ref, o_ref):
    # scale_ref: (1, 1) f32 in SMEM; x_ref / o_ref: (tile_r, lanes) in VMEM.
    x = x_ref[...]
    s = scale_ref[0, 0]
    if x.dtype != jnp.float32:
        # Native-dtype multiply for bf16/f16 (intentional: output keeps input dtype).
        s = s.astype(x.dtype)
    o_ref[...] = (x * s).astype(o_ref.dtype)


def scale_layer(data: jax.Array, scale: jax.Array) -> jax.Array:
    """data: any-shape float tensor (e.g. NCHW). scale: shape (1,) parameter."""
    orig_shape = data.shape
    dtype = data.dtype
    total = int(data.size)

    itemsize = jnp.dtype(dtype).itemsize
    sublane = {4: 8, 2: 16, 1: 32}.get(itemsize, 8)

    # Lane-dense width (multiple of 128) that divides the element count exactly,
    # so the flat reshape is a free view and no pad/slice ops are emitted.
    lanes = None
    for cand in (1024, 512, 256, 128):
        if total % cand == 0:
            lanes = cand
            break
    if lanes is None:                      # ragged total: pad < lanes elements
        lanes = 1024 if total >= 1024 else 128

    rows = pl.cdiv(total, lanes)
    padded = rows * lanes

    tile_bytes, vmem_limit = _chip_defaults()
    tile_r_budget = max(sublane, (tile_bytes // (lanes * itemsize)) // sublane * sublane)

    if rows <= sublane:
        # Too small to split along sublanes: single full-extent block (always legal).
        tile_r = rows
    else:
        # Guarantee >= 2 grid steps (keeps both TCs busy on v7x), then cap by VMEM budget.
        half = pl.cdiv(pl.cdiv(rows, 2), sublane) * sublane
        tile_r = max(sublane, min(tile_r_budget, half))

    grid = (pl.cdiv(rows, tile_r),)        # ragged final block handled by Pallas masking

    flat = data.reshape(-1)
    if padded != total:
        flat = jnp.pad(flat, (0, padded - total))
    x2d = flat.reshape(rows, lanes)

    scale_smem = scale.reshape(1, 1).astype(jnp.float32)

    out2d = pl.pallas_call(
        _scale_kernel,
        out_shape=jax.ShapeDtypeStruct((rows, lanes), dtype),
        grid=grid,
        in_specs=[
            pl.BlockSpec(memory_space=pltpu.SMEM),                  # f32 scalar scale
            pl.BlockSpec((tile_r, lanes), lambda i: (i, 0)),        # row-tiled input
        ],
        out_specs=pl.BlockSpec((tile_r, lanes), lambda i: (i, 0)),  # row-tiled output
        compiler_params=pltpu.CompilerParams(
            dimension_semantics=("parallel",),   # shards grid across TCs on v7x
            vmem_limit_bytes=vmem_limit,         # never let default scoped cap shrink tiles
        ),
    )(scale_smem, x2d)

    out_flat = out2d.reshape(-1)
    if padded != total:
        out_flat = out_flat[:total]
    return out_flat.reshape(orig_shape)


if __name__ == "__main__":
    key = jax.random.PRNGKey(0)

    # Deterministic parameter init, matching nn.Parameter(Tensor([0.001])).
    scale_param = jnp.array([0.001], dtype=jnp.float32)

    # Small NCHW input consistent with the module's forward (128-aligned -> no pad path).
    x = jax.random.normal(key, (2, 4, 16, 16), dtype=jnp.float32)
    out = scale_layer(x, scale_param)
    jax.block_until_ready(out)
    ref = x * scale_param[0]
    assert out.shape == x.shape and out.dtype == x.dtype
    assert jnp.allclose(out, ref, rtol=1e-6, atol=1e-6)

    # Ragged element count (exercises the pad/slice fallback).
    x2 = jax.random.normal(jax.random.PRNGKey(1), (2, 3, 17, 17), dtype=jnp.float32)
    out2 = scale_layer(x2, scale_param)
    jax.block_until_ready(out2)
    ref2 = x2 * scale_param[0]
    assert out2.shape == x2.shape and jnp.allclose(out2, ref2, rtol=1e-6, atol=1e-6)

    # Medium tensor (exercises the multi-step, >=2-grid-block path).
    x3 = jax.random.normal(jax.random.PRNGKey(2), (2, 8, 128, 128), dtype=jnp.float32)
    out3 = scale_layer(x3, scale_param)
    jax.block_until_ready(out3)
    ref3 = x3 * scale_param[0]
    assert out3.shape == x3.shape and jnp.allclose(out3, ref3, rtol=1e-6, atol=1e-6)

    print("KERNEL_OK")
</pallas_src>

<mosaic_0001>
module attributes {stable_mosaic.version = 11 : i64} {
  func.func @_scale_kernel(%arg0: i32, %arg1: memref<1x1xf32, #tpu.memory_space<smem>>, %arg2: memref<2x1024xf32, #tpu.memory_space<vmem>>, %arg3: memref<2x1024xf32, #tpu.memory_space<vmem>>) attributes {dimension_semantics = [#tpu.dimension_semantics<parallel>], iteration_bounds = array<i64: 1>, scalar_prefetch = 0 : i64, scratch_operands = 0 : i64, tpu.core_type = #tpu.core_type<tc>, window_params = [{transform_indices = @transform_0, window_bounds = array<i64: 1, 1>}, {transform_indices = @transform_1, window_bounds = array<i64: 2, 1024>}, {transform_indices = @transform_2, window_bounds = array<i64: 2, 1024>}]} {
    %c0 = arith.constant 0 : index
    %c0_0 = arith.constant 0 : index
    %0 = vector.load %arg2[%c0, %c0_0] : memref<2x1024xf32, #tpu.memory_space<vmem>>, vector<2x1024xf32>
    %c0_1 = arith.constant 0 : index
    %c0_2 = arith.constant 0 : index
    %1 = memref.load %arg1[%c0_1, %c0_2] : memref<1x1xf32, #tpu.memory_space<smem>>
    %2 = vector.broadcast %1 : f32 to vector<2x1024xf32>
    %3 = arith.mulf %0, %2 : vector<2x1024xf32>
    %c0_3 = arith.constant 0 : index
    %c0_4 = arith.constant 0 : index
    %4 = vector.load %arg3[%c0_3, %c0_4] : memref<2x1024xf32, #tpu.memory_space<vmem>>, vector<2x1024xf32>
    tpu.vector_store %arg3[%c0_3, %c0_4], %3 {strides = array<i32>} : memref<2x1024xf32, #tpu.memory_space<vmem>>, vector<2x1024xf32>,
    return
  }
  func.func @transform_0(%arg0: i32) -> (i32, i32) {
    %c0_i32 = arith.constant 0 : i32
    %c0_i32_0 = arith.constant 0 : i32
    %c0_i32_1 = arith.constant 0 : i32
    return %c0_i32, %c0_i32_0 : i32, i32
  }
  func.func @transform_1(%arg0: i32) -> (i32, i32) {
    %c0_i32 = arith.constant 0 : i32
    %c0_i32_0 = arith.constant 0 : i32
    return %arg0, %c0_i32 : i32, i32
  }
  func.func @transform_2(%arg0: i32) -> (i32, i32) {
    %c0_i32 = arith.constant 0 : i32
    %c0_i32_0 = arith.constant 0 : i32
    return %arg0, %c0_i32 : i32, i32
  }
}

</mosaic_0001>

<llo_original>
// kernel: tpu_custom_call.1
$region0: #{tpu_custom_call.1}
  #allocation0 [shape = 'u32[]', space=smem, size = 0x4, offset = 0x4, fixed_abs, tag = 'smem constant byte address 0x4 - core index']
  #allocation1 [shape = 'u32[144,128]{1,0:T(1,128)}', space=vmem, size = 0x12000, scoped, tag = 'internal scratch']
  #allocation2 [shape = 'f32[1,1]{1,0:T(1,128)S(6)}', space=smem, size = 0x200, scoped, tag = 'scoped memory for tpu_custom_call.1']
  %s0 = inlined_call_operand.<no memory space> [shape: f32[1,1], index: 0, kind: input, shape index: {}]
  %s1 = inlined_call_operand.hbm [shape: f32[2,1024], index: 1, kind: input, shape index: {}]
  %s2 = inlined_call_operand.hbm [shape: f32[2,1024], index: 2, kind: output, shape index: {}]
  %s3 = sld [smem:[#allocation0]]
  $region22: #{tpu_custom_call.1} parent=0
    _
  %s5 = ssub.s32 1, %s3
  %s6 = scalar_select 0, %s5, %s3
  %7 = sst [smem:[#allocation2]] %s0
  $region1: #{tpu_custom_call.1} parent=0
    #allocation3 [shape = 'u8[8192]{0}', space=vmem, size = 0x2000, scoped, tag = 'input window, operand 1, single buffered']
    #allocation4 [shape = 's32[1]{0}', space=sflag, size = 0x4, scoped, tag = 'scoped memory for tpu_custom_call.1']
    #allocation5 [shape = 's32[1]{0}', space=sflag, size = 0x4, scoped, tag = 'scoped memory for tpu_custom_call.1']
    #allocation6 [shape = 'u8[8192]{0}', space=vmem, size = 0x2000, scoped, tag = 'output window, operand 0, single buffered']
    %8 = vsyncpa [#allocation4], 0
    %9 = vsyncpa [#allocation5], 0
    // Predicated region
    $region2: #{tpu_custom_call.1} parent=1 // pred_check
      _
    $region3: #{tpu_custom_call.1} parent=1 // pred_check_branch
      %11 = sbr.rel (0) target = $region5
    $region4: #{tpu_custom_call.1} parent=1 // pred_region
      _
    $region5: #{tpu_custom_call.1} parent=1 // pred_fallthru
      _
    // Predicated region
    $region6: #{tpu_custom_call.1} parent=1 // pred_check
      _
    $region7: #{tpu_custom_call.1} parent=1 // pred_check_branch
      %13 = sbr.rel (0) target = $region9
    $region8: #{tpu_custom_call.1} parent=1 // pred_region
      %s15 = ssub.s32 256, 256
      %16 = vsyncadd [#allocation4], %s15
      %s18 = sshll.u32 [#allocation3], 4
      %s19 = int_to_ptr.vmem [resolvable:$true] %s18
      %21 = dma.hbm_to_vmem [thread:$0]  %s1, 256, %s19, [#allocation4]
    $region9: #{tpu_custom_call.1} parent=1 // pred_fallthru
      _
    // Predicated region
    $region10: #{tpu_custom_call.1} parent=1 // pred_check
      _
    $region11: #{tpu_custom_call.1} parent=1 // pred_check_branch
      %23 = sbr.rel (0) target = $region13
    $region12: #{tpu_custom_call.1} parent=1 // pred_region
      %24 = dma.done [#allocation4], 256
    $region13: #{tpu_custom_call.1} parent=1 // pred_fallthru
      _
    %v25 = vld [vmem:[#allocation3] sm:$0xff]
    %v26 = vld [vmem:[#allocation3 + $0x8] sm:$0xff]
    %s27 = sld [smem:[#allocation2]]
    %v28 = vstv %s27
    %v29 = vmul.f32 %v25, %v28
    %v30 = vmul.f32 %v26, %v28
    %31 = vst [vmem:[#allocation6] sm:$0xff] %v29
    %32 = vst [vmem:[#allocation6 + $0x8] sm:$0xff] %v30
    // Predicated region
    $region14: #{tpu_custom_call.1} parent=1 // pred_check
      _
    $region15: #{tpu_custom_call.1} parent=1 // pred_check_branch
      %34 = sbr.rel (0) target = $region17
    $region16: #{tpu_custom_call.1} parent=1 // pred_region
      %s36 = ssub.s32 256, 256
      %37 = vsyncadd [#allocation5], %s36
      %s39 = sshll.u32 [#allocation6], 4
      %s40 = int_to_ptr.vmem [resolvable:$true] %s39
      %42 = dma.vmem_to_hbm [thread:$0]  %s40, 256, %s2, [#allocation5]
    $region17: #{tpu_custom_call.1} parent=1 // pred_fallthru
      _
    // Predicated region
    $region18: #{tpu_custom_call.1} parent=1 // pred_check
      _
    $region19: #{tpu_custom_call.1} parent=1 // pred_check_branch
      %44 = sbr.rel (0) target = $region21
    $region20: #{tpu_custom_call.1} parent=1 // pred_region
      %45 = dma.done [#allocation5], 256
    $region21: #{tpu_custom_call.1} parent=1 // pred_fallthru
      _
    %46 = vsyncpa [#allocation4], 1
    %47 = vsyncpa [#allocation5], 1

</llo_original>
